<compile_context>
chip_gen: v7x
topology: tpu7x:2x2x1
jax: 0.10.0
libtpu: 0.0.40
codegen_flags: <defaults>
</compile_context>

<pallas_src>
import jax
import jax.numpy as jnp
from jax.experimental import pallas as pl
from jax.experimental.pallas import tpu as pltpu

SUBLANE = 8  # vreg sublanes for f32 (second-to-last dim granularity)


def _round_up(x, m):
    return ((x + m - 1) // m) * m


# ----------------------------- Pallas kernel --------------------------------
def _linear_relu_kernel(x_ref, w_ref, b_ref, o_ref):
    # x_ref: (tm, K) f32 tile, w_ref: (K, N) bf16 resident weight,
    # b_ref: (1, N) f32 bias, o_ref: (tm, N) f32 output tile.
    x = x_ref[...].astype(jnp.bfloat16)            # in-vreg cast; no extra HBM traffic
    y = jnp.dot(x, w_ref[...], preferred_element_type=jnp.float32)   # MXU, f32 acc
    # Bias add + ReLU in f32 on the VPU (v5e has no bf16 VPU); store true N lanes.
    o_ref[...] = jnp.maximum(y + b_ref[...], 0.0).astype(o_ref.dtype)


def linear_relu_pallas(x2d, w_bf16, b2d, *, tm_max=2048):
    """x2d: (M, K) f32, w_bf16: (K, N) bf16, b2d: (1, N) f32  ->  (M, N) f32."""
    M, K = x2d.shape
    Kw, N = w_bf16.shape
    assert K == Kw and b2d.shape == (1, N)

    # Only the row dimension is padded (to a sublane/tile multiple). K and N are
    # kept at their true sizes: block last dim == full array dim is legal, and it
    # avoids moving 3-4x padded bytes through HBM on this mem-bound kernel.
    Mp = _round_up(M, SUBLANE)
    tm = min(Mp, tm_max)
    # v7x has 2 TensorCores: for large M make sure the "parallel" grid has at
    # least 2 steps so both cores get work.  At the toy size (Mp=16) one step
    # is best (avoids ~0.35 us per-step overhead); v5e/v6e have 1 TC anyway.
    if Mp >= 1024 and Mp // tm < 2:
        tm = _round_up((Mp + 1) // 2, SUBLANE)
    Mp = _round_up(Mp, tm)
    grid_m = Mp // tm

    # Row padding only when needed (demo shapes: M=16 -> no pad, no final slice).
    # NOTE: padded rows compute relu(bias) != 0 and are sliced away below.
    xp = x2d if Mp == M else jnp.zeros((Mp, K), x2d.dtype).at[:M].set(x2d)

    # VMEM budget: double-buffered f32 x/out tiles + resident bf16 w + f32 b.
    # Must fit the *default* scoped-VMEM limit on every generation (16 MiB on v5e).
    vmem_bytes = 2 * tm * (K + N) * 4 + K * N * 2 + N * 4
    assert vmem_bytes < 12 * 1024 * 1024, "row tile too large; lower tm_max"

    # TODO(synk): for real hidden sizes (several thousand), add N tiling and a
    # K-tiled f32 accumulator with pl.when init/finalize instead of keeping the
    # whole weight resident (v7x has only 64 MiB VMEM per TensorCore).
    out = pl.pallas_call(
        _linear_relu_kernel,
        out_shape=jax.ShapeDtypeStruct((Mp, N), jnp.float32),
        grid=(grid_m,),
        in_specs=[
            pl.BlockSpec((tm, K), lambda i: (i, 0)),   # x row tile, true K lanes
            pl.BlockSpec((K, N), lambda i: (0, 0)),    # weight resident across steps
            pl.BlockSpec((1, N), lambda i: (0, 0)),    # bias resident across steps
        ],
        out_specs=pl.BlockSpec((tm, N), lambda i: (i, 0)),
        compiler_params=pltpu.CompilerParams(
            dimension_semantics=("parallel",),          # rows are independent
        ),
    )(xp, w_bf16, b2d)

    return out if Mp == M else out[:M]


# --------------------------- wrapped inner module ----------------------------
class PallasLinearReLU:
    """The concrete `module` that ModelWrapper wraps (Linear + ReLU)."""

    def __init__(self, hidden_in, hidden_out, key):
        kw, kb = jax.random.split(key)
        self.w = (jax.random.normal(kw, (hidden_in, hidden_out), jnp.float32)
                  * (2.0 / hidden_in) ** 0.5)
        self.b = jax.random.normal(kb, (1, hidden_out), jnp.float32) * 0.01
        # Hoisted out of the per-call path: MXU operand copy built once here.
        self.w_bf16 = self.w.astype(jnp.bfloat16)

    def __call__(self, x):
        # x: (batch, seq, hidden_in)
        batch, seq, hidden = x.shape
        x2d = x.reshape(batch * seq, hidden)
        y2d = linear_relu_pallas(x2d, self.w_bf16, self.b)
        return y2d.reshape(batch, seq, self.w.shape[1])


# ------------------------------- ModelWrapper --------------------------------
class ModelWrapper:
    """Faithful port of torch ModelWrapper: forward() delegates to the module."""

    def __init__(self, module):
        self.module = module

    def __call__(self, *args, **kwargs):
        return self.module(*args, **kwargs)


# ---------------------------------- main --------------------------------------
if __name__ == "__main__":
    key = jax.random.PRNGKey(0)
    k_x, k_m = jax.random.split(key)

    batch, seq, hidden = 2, 8, 32
    x = jax.random.normal(k_x, (batch, seq, hidden), jnp.float32)

    inner = PallasLinearReLU(hidden, hidden, k_m)
    model = ModelWrapper(inner)

    out = jax.block_until_ready(model(x))
    assert out.shape == (batch, seq, hidden)

    # Tight check: reference with the same bf16 operand rounding the MXU sees
    # (f32 accumulation on both sides).
    x2d = x.reshape(batch * seq, hidden)
    x_bf = x2d.astype(jnp.bfloat16).astype(jnp.float32)
    w_bf = inner.w.astype(jnp.bfloat16).astype(jnp.float32)
    ref = jnp.maximum(x_bf @ w_bf + inner.b, 0.0).reshape(batch, seq, hidden)
    assert jnp.allclose(out, ref, atol=1e-4, rtol=1e-4)

    # Loose sanity check against the pure-f32 torch-module semantics.
    ref_f32 = jnp.maximum(x2d @ inner.w + inner.b, 0.0).reshape(batch, seq, hidden)
    assert jnp.allclose(out, ref_f32, atol=5e-2, rtol=5e-2)

    print("KERNEL_OK")
</pallas_src>

<mosaic_0001>
module attributes {stable_mosaic.version = 11 : i64} {
  func.func @_linear_relu_kernel(%arg0: i32, %arg1: memref<16x32xf32, #tpu.memory_space<vmem>>, %arg2: memref<32x32xbf16, #tpu.memory_space<vmem>>, %arg3: memref<1x32xf32, #tpu.memory_space<vmem>>, %arg4: memref<16x32xf32, #tpu.memory_space<vmem>>) attributes {dimension_semantics = [#tpu.dimension_semantics<parallel>], iteration_bounds = array<i64: 1>, scalar_prefetch = 0 : i64, scratch_operands = 0 : i64, tpu.core_type = #tpu.core_type<tc>, window_params = [{transform_indices = @transform_0, window_bounds = array<i64: 16, 32>}, {pipeline_mode = #tpu.pipeline_mode<synchronous>, transform_indices = @transform_1, window_bounds = array<i64: 32, 32>}, {pipeline_mode = #tpu.pipeline_mode<synchronous>, transform_indices = @transform_2, window_bounds = array<i64: 1, 32>}, {transform_indices = @transform_3, window_bounds = array<i64: 16, 32>}]} {
    %c0 = arith.constant 0 : index
    %c0_0 = arith.constant 0 : index
    %0 = vector.load %arg1[%c0, %c0_0] : memref<16x32xf32, #tpu.memory_space<vmem>>, vector<16x32xf32>
    %1 = arith.truncf %0 : vector<16x32xf32> to vector<16x32xbf16>
    %c0_1 = arith.constant 0 : index
    %c0_2 = arith.constant 0 : index
    %2 = vector.load %arg2[%c0_1, %c0_2] : memref<32x32xbf16, #tpu.memory_space<vmem>>, vector<32x32xbf16>
    %cst = arith.constant dense<0.000000e+00> : vector<16x32xf32>
    %3 = tpu.matmul %1, %2, %cst {dimension_numbers = #tpu.dot_dimension_numbers<[1], [0], [0], [1], [0, 0, 1, 1], [], []>} : vector<16x32xbf16>, vector<32x32xbf16>, vector<16x32xf32> -> vector<16x32xf32>
    %c0_3 = arith.constant 0 : index
    %c0_4 = arith.constant 0 : index
    %4 = vector.load %arg3[%c0_3, %c0_4] : memref<1x32xf32, #tpu.memory_space<vmem>>, vector<1x32xf32>
    %5 = vector.broadcast %4 : vector<1x32xf32> to vector<16x32xf32>
    %6 = arith.addf %3, %5 : vector<16x32xf32>
    %cst_5 = arith.constant 0.000000e+00 : f32
    %7 = vector.broadcast %cst_5 : f32 to vector<16x32xf32>
    %8 = arith.maximumf %6, %7 : vector<16x32xf32>
    %c0_6 = arith.constant 0 : index
    %c0_7 = arith.constant 0 : index
    %9 = vector.load %arg4[%c0_6, %c0_7] : memref<16x32xf32, #tpu.memory_space<vmem>>, vector<16x32xf32>
    tpu.vector_store %arg4[%c0_6, %c0_7], %8 {strides = array<i32>} : memref<16x32xf32, #tpu.memory_space<vmem>>, vector<16x32xf32>,
    return
  }
  func.func @transform_0(%arg0: i32) -> (i32, i32) {
    %c0_i32 = arith.constant 0 : i32
    %c0_i32_0 = arith.constant 0 : i32
    return %arg0, %c0_i32 : i32, i32
  }
  func.func @transform_1(%arg0: i32) -> (i32, i32) {
    %c0_i32 = arith.constant 0 : i32
    %c0_i32_0 = arith.constant 0 : i32
    %c0_i32_1 = arith.constant 0 : i32
    return %c0_i32, %c0_i32_0 : i32, i32
  }
  func.func @transform_2(%arg0: i32) -> (i32, i32) {
    %c0_i32 = arith.constant 0 : i32
    %c0_i32_0 = arith.constant 0 : i32
    %c0_i32_1 = arith.constant 0 : i32
    return %c0_i32, %c0_i32_0 : i32, i32
  }
  func.func @transform_3(%arg0: i32) -> (i32, i32) {
    %c0_i32 = arith.constant 0 : i32
    %c0_i32_0 = arith.constant 0 : i32
    return %arg0, %c0_i32 : i32, i32
  }
}

</mosaic_0001>

<llo_original>
// kernel: tpu_custom_call.1
$region0: #{tpu_custom_call.1}
  #allocation0 [shape = 'u32[]', space=smem, size = 0x4, offset = 0x4, fixed_abs, tag = 'smem constant byte address 0x4 - core index']
  #allocation1 [shape = 'u32[144,128]{1,0:T(1,128)}', space=vmem, size = 0x12000, scoped, tag = 'internal scratch']
  %s0 = inlined_call_operand.hbm [shape: f32[16,32], index: 0, kind: input, shape index: {}]
  %s1 = inlined_call_operand.hbm [shape: bf16[32,32], index: 1, kind: input, shape index: {}]
  %s2 = inlined_call_operand.vmem [shape: f32[1,32], index: 2, kind: input, shape index: {}]
  %s3 = inlined_call_operand.hbm [shape: f32[16,32], index: 3, kind: output, shape index: {}]
  %s4 = sld [smem:[#allocation0]]
  $region30: #{tpu_custom_call.1} parent=0
    _
  %s6 = ssub.s32 1, %s4
  %s7 = scalar_select 0, %s6, %s4
  $region1: #{tpu_custom_call.1} parent=0
    #allocation2 [shape = 'u8[8192]{0}', space=vmem, size = 0x2000, scoped, tag = 'input window, operand 0, single buffered']
    #allocation3 [shape = 's32[1]{0}', space=sflag, size = 0x4, scoped, tag = 'scoped memory for tpu_custom_call.1']
    #allocation4 [shape = 's32[1]{0}', space=sflag, size = 0x4, scoped, tag = 'scoped memory for tpu_custom_call.1']
    #allocation5 [shape = 'u8[8192]{0}', space=vmem, size = 0x2000, scoped, tag = 'input window, operand 1, single buffered']
    #allocation6 [shape = 's32[1]{0}', space=sflag, size = 0x4, scoped, tag = 'scoped memory for tpu_custom_call.1']
    #allocation7 [shape = 'u8[8192]{0}', space=vmem, size = 0x2000, scoped, tag = 'output window, operand 0, single buffered']
    %8 = vsyncpa [#allocation3], 0
    %9 = vsyncpa [#allocation6], 0
    %10 = vsyncpa [#allocation4], 0
    // Predicated region
    $region2: #{tpu_custom_call.1} parent=1 // pred_check
      _
    $region3: #{tpu_custom_call.1} parent=1 // pred_check_branch
      %12 = sbr.rel (0) target = $region5
    $region4: #{tpu_custom_call.1} parent=1 // pred_region
      %s14 = ssub.s32 256, 256
      %15 = vsyncadd [#allocation3], %s14
      %s16 = sshll.u32 [#allocation2], 4
      %s17 = int_to_ptr.vmem [resolvable:$true] %s16
      %22 = dma.hbm_to_vmem [thread:$0]  %s0, 256, %s17, [#allocation3], 128, 128, 8
    $region5: #{tpu_custom_call.1} parent=1 // pred_fallthru
      _
    // Predicated region
    $region6: #{tpu_custom_call.1} parent=1 // pred_check
      _
    $region7: #{tpu_custom_call.1} parent=1 // pred_check_branch
      %24 = sbr.rel (0) target = $region9
    $region8: #{tpu_custom_call.1} parent=1 // pred_region
      %s26 = ssub.s32 256, 256
      %27 = vsyncadd [#allocation6], %s26
      %s28 = sshll.u32 [#allocation5], 4
      %s29 = int_to_ptr.vmem [resolvable:$true] %s28
      %34 = dma.hbm_to_vmem [thread:$0]  %s1, 256, %s29, [#allocation6], 64, 64, 4
    $region9: #{tpu_custom_call.1} parent=1 // pred_fallthru
      _
    // Predicated region
    $region10: #{tpu_custom_call.1} parent=1 // pred_check
      _
    $region11: #{tpu_custom_call.1} parent=1 // pred_check_branch
      %36 = sbr.rel (0) target = $region13
    $region12: #{tpu_custom_call.1} parent=1 // pred_region
      _
    $region13: #{tpu_custom_call.1} parent=1 // pred_fallthru
      _
    // Predicated region
    $region14: #{tpu_custom_call.1} parent=1 // pred_check
      _
    $region15: #{tpu_custom_call.1} parent=1 // pred_check_branch
      %38 = sbr.rel (0) target = $region17
    $region16: #{tpu_custom_call.1} parent=1 // pred_region
      %39 = dma.done [#allocation3], 256
    $region17: #{tpu_custom_call.1} parent=1 // pred_fallthru
      _
    // Predicated region
    $region18: #{tpu_custom_call.1} parent=1 // pred_check
      _
    $region19: #{tpu_custom_call.1} parent=1 // pred_check_branch
      %41 = sbr.rel (0) target = $region21
    $region20: #{tpu_custom_call.1} parent=1 // pred_region
      %42 = dma.done [#allocation6], 256
    $region21: #{tpu_custom_call.1} parent=1 // pred_fallthru
      _
    %v44 = vld [vmem:[#allocation2] sm:$0xff]
    %v45 = vld [vmem:[#allocation2 + $0x8] sm:$0xff]
    %v46 = vpack.c.bf16 %v45, %v44
    %v47 = vld [vmem:[#allocation5] sm:$0xf]
    %v48 = vld [vmem:[#allocation5 + $0x4] sm:$0xf]
    %v49 = vld [vmem:[#allocation5 + $0x8] sm:$0xf]
    %v50 = vld [vmem:[#allocation5 + $0xc] sm:$0xf]
    %v51 = vld [vmem:[%s2] sm:$0x1]
    %v53 = vlaneseq
    %v54 = vshrl.u32 %v53, 7
    %v55 = vsub.s32 0, %v54
    %v56 = vrot.slane %v51, %v55
    %v62 = vunpack.c.l.b16 %v47
    %v63 = vunpack.c.l.b16 %v48
    %v64 = vunpack.c.l.b16 %v49
    %v65 = vunpack.c.l.b16 %v50
    %v66 = vpack.c.b16 %v63, %v62
    %v67 = vpack.c.b16 %v65, %v64
    %vm70 = vcmask 261120
    %v72 = vsel %vm70, %v46, 0
    %74 = vmatprep.subr.bf16.mxu0 0
    %75 = vmatpush1.bf16.msra.mxu0 %v66
    %76 = vmatprep.subr.bf16.mxu0 0
    %77 = vmatpush1.bf16.msra.mxu0 %v67
    %78 = vmatprep.subr.bf16.mxu0 0
    %79 = vmatpush1.bf16.msra.mxu0 0
    %80 = vmatprep.subr.bf16.mxu0 0
    %81 = vmatpush1.bf16.msra.mxu0 0
    %82 = vmatprep.subr.bf16.mxu0 0
    %83 = vmatpush1.bf16.msra.mxu0 0
    %84 = vmatprep.subr.bf16.mxu0 0
    %85 = vmatpush1.bf16.msra.mxu0 0
    %86 = vmatprep.subr.bf16.mxu0 0
    %87 = vmatpush1.bf16.msra.mxu0 0
    %88 = vmatprep.subr.bf16.mxu0 0
    %89 = vmatpush1.bf16.msra.mxu0 0
    %90 = vmatprep.subr.bf16.mxu0 0
    %91 = vmatpush1.bf16.msra.mxu0 0
    %92 = vmatprep.subr.bf16.mxu0 0
    %93 = vmatpush1.bf16.msra.mxu0 0
    %94 = vmatprep.subr.bf16.mxu0 0
    %95 = vmatpush1.bf16.msra.mxu0 0
    %96 = vmatprep.subr.bf16.mxu0 0
    %97 = vmatpush1.bf16.msra.mxu0 0
    %98 = vmatprep.subr.bf16.mxu0 0
    %99 = vmatpush1.bf16.msra.mxu0 0
    %100 = vmatprep.subr.bf16.mxu0 0
    %101 = vmatpush1.bf16.msra.mxu0 0
    %102 = vmatprep.subr.bf16.mxu0 0
    %103 = vmatpush1.bf16.msra.mxu0 0
    %104 = vmatprep.subr.bf16.mxu0 0
    %105 = vmatpush1.bf16.msra.mxu0 0
    %106 = vmatprep.mubr.bf16.mxu0 0
    %107 = vmatmul.mubr.bf16.gmra.mrb[0].mxu0 %v72
    %v108 = vpop.f32.mrb[0].mxu0
    %v109 = vadd.f32 %v56, %v108
    %v110 = vpop.f32.mrb[0].mxu0
    %v111 = vpop.f32.mrb[0].mxu0
    %v112 = vadd.f32 %v56, %v111
    %v113 = vpop.f32.mrb[0].mxu0
    %114 = vdwg.mxu0
    %v115 = vmax.f32 %v109, 0.0
    %v116 = vmax.f32 %v112, 0.0
    %117 = vst.msk [vmem:[#allocation7] sm:$0xff] %vm70, %v115
    %118 = vst.msk [vmem:[#allocation7 + $0x8] sm:$0xff] %vm70, %v116
    // Predicated region
    $region22: #{tpu_custom_call.1} parent=1 // pred_check
      _
    $region23: #{tpu_custom_call.1} parent=1 // pred_check_branch
      %120 = sbr.rel (0) target = $region25
    $region24: #{tpu_custom_call.1} parent=1 // pred_region
      %s122 = ssub.s32 256, 256
      %123 = vsyncadd [#allocation4], %s122
      %s124 = sshll.u32 [#allocation7], 4
      %s125 = int_to_ptr.vmem [resolvable:$true] %s124
      %130 = dma.vmem_to_hbm [thread:$0]  %s125, 256, %s3, [#allocation4], 128, 128, 8
    $region25: #{tpu_custom_call.1} parent=1 // pred_fallthru
      _
    // Predicated region
    $region26: #{tpu_custom_call.1} parent=1 // pred_check
      _
    $region27: #{tpu_custom_call.1} parent=1 // pred_check_branch
      %132 = sbr.rel (0) target = $region29
    $region28: #{tpu_custom_call.1} parent=1 // pred_region
      %133 = dma.done [#allocation4], 256
    $region29: #{tpu_custom_call.1} parent=1 // pred_fallthru
      _
    %134 = vsyncpa [#allocation3], 1
    %135 = vsyncpa [#allocation6], 1
    %136 = vsyncpa [#allocation4], 1

</llo_original>
